<compile_context>
chip_gen: v7x
topology: tpu7x:2x2x1
jax: 0.10.0
libtpu: 0.0.40
codegen_flags: <defaults>
</compile_context>

<pallas_src>
import functools

import jax
import jax.numpy as jnp
from jax.experimental import pallas as pl
from jax.experimental.pallas import tpu as pltpu

_MiB = 1024 * 1024
_SMALL_C_LANE_THRESHOLD = 32   # (M, C) inputs with C <= this go lane-dense


def _cdiv(a, b):
    return -(-a // b)


def _round_up(a, b):
    return _cdiv(a, b) * b


def _vmem_capacity_bytes():
    try:
        cap = int(pltpu.get_tpu_info().vmem_capacity_bytes)
        if cap > 0:
            return cap
    except Exception:
        pass
    return 64 * _MiB           # conservative: v7x per-TensorCore VMEM


def _vmem_budgets():
    cap = _vmem_capacity_bytes()
    vmem_limit = min(64 * _MiB, (cap * 3) // 4)   # 48 MiB on v7x, 64 on v5e/v6e
    work = max(8 * _MiB, min(40 * _MiB, vmem_limit - 8 * _MiB))
    return work, vmem_limit


def _focal_pow(base, gamma):
    """base**gamma with compile-time strength reduction for integer gamma."""
    g = float(gamma)
    if g == 0.0:
        return jnp.ones_like(base)
    if g == int(g) and 1 <= int(g) <= 8:
        r = base
        for _ in range(int(g) - 1):
            r = r * base
        return r
    return jnp.power(jnp.maximum(base, 0.0), g)


def _prep_target(target):
    """Keep targets in a narrow native int dtype; cast weird dtypes to int32."""
    t = jnp.asarray(target)
    if not jnp.issubdtype(t.dtype, jnp.integer) or t.dtype.itemsize > 4:
        t = t.astype(jnp.int32)
    return t


def _alpha_vector(alpha, c):
    if alpha is None:
        return False, None
    if isinstance(alpha, (float, int)) and not isinstance(alpha, bool):
        av = jnp.array([float(alpha), 1.0 - float(alpha)], dtype=jnp.float32)
    else:
        av = jnp.asarray(alpha, dtype=jnp.float32).reshape(-1)
    if av.shape[0] < c:
        # NOTE: torch would raise on an out-of-range gather; we zero-weight
        # the extra classes instead (documented behaviour).
        av = jnp.pad(av, (0, c - av.shape[0]))
    else:
        av = av[:c]
    return True, av


# ----------------------------------------------------------------------------
# NCHW path: layout (N, C, H*W), classes on sublanes, H*W lane-dense.
# ----------------------------------------------------------------------------
def _focal_nchw_kernel(*refs, gamma, use_alpha, hw_valid, t_hw, c, ragged):
    if use_alpha:
        x_ref, t_ref, a_ref, out_ref = refs
    else:
        x_ref, t_ref, out_ref = refs
        a_ref = None

    j = pl.program_id(1)

    x = x_ref[0].astype(jnp.float32)            # (C, T_HW) classes on sublanes
    t = t_ref[0].astype(jnp.int32)              # (1, T_HW) class ids

    # log-softmax pieces along the class (sublane) axis
    m = jnp.max(x, axis=0, keepdims=True)
    xs = x - m
    lse = jnp.log(jnp.sum(jnp.exp(xs), axis=0, keepdims=True))

    # one select mask, reused for the logit gather and the alpha gather
    cls = jax.lax.broadcasted_iota(jnp.int32, (c, 1), 0)
    sel = cls == t                              # (C, T_HW) via broadcast
    x_t = jnp.sum(jnp.where(sel, xs, 0.0), axis=0, keepdims=True)
    logpt = x_t - lse                           # (1, T_HW)
    pt = jnp.minimum(jnp.exp(logpt), 1.0)       # keep 1 - pt >= 0

    if use_alpha:
        at = jnp.sum(jnp.where(sel, a_ref[...].astype(jnp.float32), 0.0),
                     axis=0, keepdims=True)     # alpha[target]
        logpt = logpt * at

    loss = -1.0 * _focal_pow(1.0 - pt, gamma) * logpt   # (1, T_HW)

    def _store(v):
        out_ref[0, 0] = jnp.sum(v, axis=1, keepdims=True)   # (1, 1)

    if ragged:
        last = pl.num_programs(1) - 1

        @pl.when(j == last)       # only the last H*W tile can be partial
        def _():
            cols = jax.lax.broadcasted_iota(jnp.int32, (1, t_hw), 1) + j * t_hw
            _store(jnp.where(cols < hw_valid, loss, 0.0))

        @pl.when(j != last)
        def _():
            _store(loss)
    else:
        _store(loss)


# ----------------------------------------------------------------------------
# Rows path: layout (M, C) with C > 32, rows on sublanes, classes on lanes.
# ----------------------------------------------------------------------------
def _focal_rows_kernel(*refs, gamma, use_alpha, m_valid, tm, c, ragged):
    if use_alpha:
        x_ref, t_ref, a_ref, out_ref = refs
    else:
        x_ref, t_ref, out_ref = refs
        a_ref = None

    k = pl.program_id(0)

    x = x_ref[...].astype(jnp.float32)          # (TM, C)
    t = t_ref[...].astype(jnp.int32)            # (TM, 1)

    m = jnp.max(x, axis=-1, keepdims=True)
    xs = x - m
    lse = jnp.log(jnp.sum(jnp.exp(xs), axis=-1, keepdims=True))

    cols = jax.lax.broadcasted_iota(jnp.int32, (1, c), 1)
    sel = cols == t                             # (TM, C) via broadcast
    x_t = jnp.sum(jnp.where(sel, xs, 0.0), axis=-1, keepdims=True)
    logpt = x_t - lse                           # (TM, 1)
    pt = jnp.minimum(jnp.exp(logpt), 1.0)

    if use_alpha:
        at = jnp.sum(jnp.where(sel, a_ref[...].astype(jnp.float32), 0.0),
                     axis=-1, keepdims=True)
        logpt = logpt * at

    loss = -1.0 * _focal_pow(1.0 - pt, gamma) * logpt   # (TM, 1)

    def _store(v):
        out_ref[0] = jnp.sum(v, axis=0, keepdims=True)   # (1, 1)

    if ragged:
        last = pl.num_programs(0) - 1

        @pl.when(k == last)       # only the last row tile can be partial
        def _():
            rows = jax.lax.broadcasted_iota(jnp.int32, (tm, 1), 0) + k * tm
            _store(jnp.where(rows < m_valid, loss, 0.0))

        @pl.when(k != last)
        def _():
            _store(loss)
    else:
        _store(loss)


# ----------------------------------------------------------------------------
# Wrappers
# ----------------------------------------------------------------------------
def _focal_loss_nchw(x, target, gamma, alpha, size_average, lane_tile=None):
    n, c = x.shape[0], x.shape[1]
    hw = 1
    for d in x.shape[2:]:
        hw *= d
    x = x.reshape(n, c, hw)                       # free reshape, no transpose/pad
    t = _prep_target(target).reshape(n, 1, hw)

    use_alpha, av = _alpha_vector(alpha, c)

    work, vmem_limit = _vmem_budgets()
    c_sub = _round_up(c, 8)
    # ~6x headroom per lane: 2 DMA buffers (sublane padded) + live f32 temps.
    lane_cap = work // (c_sub * 4 * 6)
    lane_cap = max(128, min((lane_cap // 128) * 128, 256 * 1024))
    if lane_tile is not None:                     # test hook
        lane_cap = max(128, (int(lane_tile) // 128) * 128)
    t_hw = hw if hw <= lane_cap else lane_cap
    nt = _cdiv(hw, t_hw)
    ragged = (hw % t_hw) != 0

    kernel = functools.partial(
        _focal_nchw_kernel, gamma=float(gamma), use_alpha=use_alpha,
        hw_valid=hw, t_hw=t_hw, c=c, ragged=ragged)

    in_specs = [
        pl.BlockSpec((1, c, t_hw), lambda b, j: (b, 0, j)),   # logits
        pl.BlockSpec((1, 1, t_hw), lambda b, j: (b, 0, j)),   # targets
    ]
    operands = [x, t]
    if use_alpha:
        in_specs.append(pl.BlockSpec((c, 1), lambda b, j: (0, 0)))
        operands.append(av.reshape(c, 1))

    partials = pl.pallas_call(
        kernel,
        out_shape=jax.ShapeDtypeStruct((n, nt, 1, 1), jnp.float32),
        grid_spec=pltpu.PrefetchScalarGridSpec(
            num_scalar_prefetch=0,
            grid=(n, nt),
            in_specs=in_specs,
            out_specs=pl.BlockSpec((1, 1, 1, 1), lambda b, j: (b, j, 0, 0)),
        ),
        compiler_params=pltpu.CompilerParams(
            dimension_semantics=("parallel", "parallel"),
            vmem_limit_bytes=vmem_limit),
    )(*operands)

    total = jnp.sum(partials)
    if size_average:
        total = total / jnp.float32(n * hw)
    return total


def _focal_loss_rows(x, target, gamma, alpha, size_average, row_tile=None):
    m_rows, c = x.shape
    t = _prep_target(target).reshape(m_rows, 1)

    use_alpha, av = _alpha_vector(alpha, c)

    work, vmem_limit = _vmem_budgets()
    c_lane = _round_up(c, 128)
    tm_cap = work // (c_lane * 4 * 6)
    tm_cap = max(8, min((tm_cap // 8) * 8, 4096))
    if row_tile is not None:                      # test hook
        tm_cap = max(8, (int(row_tile) // 8) * 8)
    tm = min(tm_cap, _round_up(m_rows, 8))
    nt = _cdiv(m_rows, tm)
    ragged = (m_rows % tm) != 0

    kernel = functools.partial(
        _focal_rows_kernel, gamma=float(gamma), use_alpha=use_alpha,
        m_valid=m_rows, tm=tm, c=c, ragged=ragged)

    in_specs = [
        pl.BlockSpec((tm, c), lambda k: (k, 0)),
        pl.BlockSpec((tm, 1), lambda k: (k, 0)),
    ]
    operands = [x, t]
    if use_alpha:
        in_specs.append(pl.BlockSpec((1, c), lambda k: (0, 0)))
        operands.append(av.reshape(1, c))

    partials = pl.pallas_call(
        kernel,
        out_shape=jax.ShapeDtypeStruct((nt, 1, 1), jnp.float32),
        grid_spec=pltpu.PrefetchScalarGridSpec(
            num_scalar_prefetch=0,
            grid=(nt,),
            in_specs=in_specs,
            out_specs=pl.BlockSpec((1, 1, 1), lambda k: (k, 0, 0)),
        ),
        compiler_params=pltpu.CompilerParams(
            dimension_semantics=("parallel",),
            vmem_limit_bytes=vmem_limit),
    )(*operands)

    total = jnp.sum(partials)
    if size_average:
        total = total / jnp.float32(m_rows)
    return total


def focal_loss(logits, target, *, gamma=0.0, alpha=None, size_average=True,
               lane_tile=None, row_tile=None):
    """Pallas-TPU FocalLoss.forward.

    logits: (M, C) or (N, C, H, W) (any trailing spatial dims, NCHW-style)
    target: integer class indices with N*H*W (or M) elements total
    alpha : None, python float (-> [alpha, 1-alpha]), or list/array
    """
    x = jnp.asarray(logits)
    if x.ndim > 2:
        return _focal_loss_nchw(x, target, gamma, alpha, size_average, lane_tile)
    if x.ndim == 1:
        x = x.reshape(1, -1)
    m_rows, c = x.shape
    if c <= _SMALL_C_LANE_THRESHOLD:
        # Small-C (M, C) is lane-sparse; one transpose buys a lane-dense kernel.
        x_cm = jnp.transpose(x).reshape(1, c, m_rows)
        return _focal_loss_nchw(x_cm, target, gamma, alpha, size_average,
                                lane_tile)
    return _focal_loss_rows(x, target, gamma, alpha, size_average, row_tile)


# ----------------------------------------------------------------------------
# Pure-JAX reference mirroring the torch forward (for sanity checking).
# ----------------------------------------------------------------------------
def _focal_loss_ref(logits, target, *, gamma=0.0, alpha=None,
                    size_average=True):
    x = jnp.asarray(logits)
    if x.ndim > 2:
        n, c = x.shape[0], x.shape[1]
        x = jnp.transpose(x.reshape(n, c, -1), (0, 2, 1)).reshape(-1, c)
    if x.ndim == 1:
        x = x.reshape(1, -1)
    t = jnp.asarray(target).reshape(-1).astype(jnp.int32)
    logsm = jax.nn.log_softmax(x, axis=-1)
    logpt = jnp.take_along_axis(logsm, t[:, None], axis=1)[:, 0]
    pt = jnp.exp(logpt)
    if alpha is not None:
        if isinstance(alpha, (float, int)) and not isinstance(alpha, bool):
            a = jnp.array([float(alpha), 1.0 - float(alpha)], jnp.float32)
        else:
            a = jnp.asarray(alpha, jnp.float32)
        logpt = logpt * a[t]
    loss = -1.0 * (1.0 - pt) ** float(gamma) * logpt
    return loss.mean() if size_average else loss.sum()


if __name__ == "__main__":
    key = jax.random.PRNGKey(0)
    k1, k2, k3, k4, k5, k6, k7, k8 = jax.random.split(key, 8)

    # 1) NCHW segmentation-style input, per-class alpha list, mean.
    N, C, H, W = 2, 4, 16, 16
    logits = jax.random.normal(k1, (N, C, H, W), dtype=jnp.float32)
    target = jax.random.randint(k2, (N, H, W), 0, C, dtype=jnp.int32)
    gamma, alpha = 2.0, [0.1, 0.2, 0.3, 0.4]
    out = jax.block_until_ready(
        focal_loss(logits, target, gamma=gamma, alpha=alpha, size_average=True))
    ref = _focal_loss_ref(logits, target, gamma=gamma, alpha=alpha,
                          size_average=True)
    assert jnp.allclose(out, ref, rtol=1e-5, atol=1e-5), (out, ref)

    # 2) Default constructor path (gamma=0, alpha=None, mean) on NCHW.
    out2 = jax.block_until_ready(focal_loss(logits, target))
    ref2 = _focal_loss_ref(logits, target)
    assert jnp.allclose(out2, ref2, rtol=1e-5, atol=1e-5), (out2, ref2)

    # 3) Small-C 2-D input (routed lane-dense), float alpha, non-integer
    #    gamma, sum reduction.
    M2, C2 = 50, 2
    logits2 = jax.random.normal(k3, (M2, C2), dtype=jnp.float32)
    target2 = jax.random.randint(k4, (M2,), 0, C2, dtype=jnp.int32)
    out3 = jax.block_until_ready(
        focal_loss(logits2, target2, gamma=1.5, alpha=0.25, size_average=False))
    ref3 = _focal_loss_ref(logits2, target2, gamma=1.5, alpha=0.25,
                           size_average=False)
    assert jnp.allclose(out3, ref3, rtol=1e-5, atol=1e-5), (out3, ref3)

    # 4) NCHW with a non-tile-aligned H*W and a forced small lane tile:
    #    exercises the multi-tile + ragged-last-tile masking path.
    N4, C4, H4, W4 = 1, 3, 13, 11
    logits4 = jax.random.normal(k5, (N4, C4, H4, W4), dtype=jnp.float32)
    target4 = jax.random.randint(k6, (N4, H4, W4), 0, C4, dtype=jnp.int32)
    out4 = jax.block_until_ready(
        focal_loss(logits4, target4, gamma=2.0, alpha=None, size_average=True,
                   lane_tile=128))
    ref4 = _focal_loss_ref(logits4, target4, gamma=2.0, alpha=None,
                           size_average=True)
    assert jnp.allclose(out4, ref4, rtol=1e-5, atol=1e-5), (out4, ref4)

    # 5) Large-C rows path with per-class alpha, ragged row tiles, sum.
    M5, C5 = 37, 72
    logits5 = jax.random.normal(k7, (M5, C5), dtype=jnp.float32)
    target5 = jax.random.randint(k8, (M5,), 0, C5, dtype=jnp.int32)
    alpha5 = [((i % 7) + 1) / 10.0 for i in range(C5)]
    out5 = jax.block_until_ready(
        focal_loss(logits5, target5, gamma=2.0, alpha=alpha5,
                   size_average=False, row_tile=16))
    ref5 = _focal_loss_ref(logits5, target5, gamma=2.0, alpha=alpha5,
                           size_average=False)
    assert jnp.allclose(out5, ref5, rtol=1e-5, atol=1e-5), (out5, ref5)

    print("KERNEL_OK")
</pallas_src>

<mosaic_0001>
module attributes {stable_mosaic.version = 11 : i64} {
  func.func @_focal_nchw_kernel(%arg0: i32, %arg1: i32, %arg2: memref<1x4x256xf32, #tpu.memory_space<vmem>>, %arg3: memref<1x1x256xi32, #tpu.memory_space<vmem>>, %arg4: memref<4x1xf32, #tpu.memory_space<vmem>>, %arg5: memref<1x1x1x1xf32, #tpu.memory_space<vmem>>) attributes {dimension_semantics = [#tpu.dimension_semantics<parallel>, #tpu.dimension_semantics<parallel>], iteration_bounds = array<i64: 2, 1>, scalar_prefetch = 0 : i64, scratch_operands = 0 : i64, tpu.core_type = #tpu.core_type<tc>, window_params = [{transform_indices = @transform_0, window_bounds = array<i64: 1, 4, 256>}, {transform_indices = @transform_1, window_bounds = array<i64: 1, 1, 256>}, {pipeline_mode = #tpu.pipeline_mode<synchronous>, transform_indices = @transform_2, window_bounds = array<i64: 4, 1>}, {transform_indices = @transform_3, window_bounds = array<i64: 1, 1, 1, 1>}]} {
    %c0 = arith.constant 0 : index
    %c0_0 = arith.constant 0 : index
    %c0_1 = arith.constant 0 : index
    %0 = vector.load %arg2[%c0, %c0_0, %c0_1] : memref<1x4x256xf32, #tpu.memory_space<vmem>>, vector<1x4x256xf32>
    %1 = vector.shape_cast %0 : vector<1x4x256xf32> to vector<4x256xf32>
    %c0_2 = arith.constant 0 : index
    %c0_3 = arith.constant 0 : index
    %c0_4 = arith.constant 0 : index
    %2 = vector.load %arg3[%c0_2, %c0_3, %c0_4] : memref<1x1x256xi32, #tpu.memory_space<vmem>>, vector<1x1x256xi32>
    %3 = vector.shape_cast %2 : vector<1x1x256xi32> to vector<1x256xi32>
    %cst = arith.constant dense<0xFF800000> : vector<256xf32>
    %4 = vector.multi_reduction <maximumf>, %1, %cst [0] : vector<4x256xf32> to vector<256xf32>
    %5 = vector.shape_cast %4 : vector<256xf32> to vector<1x256xf32>
    %6 = vector.broadcast %5 : vector<1x256xf32> to vector<4x256xf32>
    %7 = arith.subf %1, %6 : vector<4x256xf32>
    %8 = math.exp %7 : vector<4x256xf32>
    %cst_5 = arith.constant dense<0.000000e+00> : vector<256xf32>
    %9 = vector.multi_reduction <add>, %8, %cst_5 [0] : vector<4x256xf32> to vector<256xf32>
    %10 = vector.shape_cast %9 : vector<256xf32> to vector<1x256xf32>
    %11 = math.log %10 : vector<1x256xf32>
    %12 = tpu.iota {dimensions = array<i32: 0>} : vector<4x1xi32>
    %13 = vector.broadcast %12 : vector<4x1xi32> to vector<4x256xi32>
    %14 = vector.broadcast %3 : vector<1x256xi32> to vector<4x256xi32>
    %15 = arith.cmpi eq, %13, %14 : vector<4x256xi32>
    %cst_6 = arith.constant 0.000000e+00 : f32
    %16 = vector.broadcast %cst_6 : f32 to vector<4x256xf32>
    %17 = arith.select %15, %7, %16 : vector<4x256xi1>, vector<4x256xf32>
    %cst_7 = arith.constant dense<0.000000e+00> : vector<256xf32>
    %18 = vector.multi_reduction <add>, %17, %cst_7 [0] : vector<4x256xf32> to vector<256xf32>
    %19 = vector.shape_cast %18 : vector<256xf32> to vector<1x256xf32>
    %20 = arith.subf %19, %11 : vector<1x256xf32>
    %21 = math.exp %20 : vector<1x256xf32>
    %cst_8 = arith.constant 1.000000e+00 : f32
    %22 = vector.broadcast %cst_8 : f32 to vector<1x256xf32>
    %23 = arith.minimumf %21, %22 : vector<1x256xf32>
    %c0_9 = arith.constant 0 : index
    %c0_10 = arith.constant 0 : index
    %24 = vector.load %arg4[%c0_9, %c0_10] : memref<4x1xf32, #tpu.memory_space<vmem>>, vector<4x1xf32>
    %cst_11 = arith.constant 0.000000e+00 : f32
    %25 = vector.shape_cast %24 : vector<4x1xf32> to vector<4x1xf32>
    %26 = vector.broadcast %25 : vector<4x1xf32> to vector<4x256xf32>
    %27 = vector.broadcast %cst_11 : f32 to vector<4x256xf32>
    %28 = arith.select %15, %26, %27 : vector<4x256xi1>, vector<4x256xf32>
    %cst_12 = arith.constant dense<0.000000e+00> : vector<256xf32>
    %29 = vector.multi_reduction <add>, %28, %cst_12 [0] : vector<4x256xf32> to vector<256xf32>
    %30 = vector.shape_cast %29 : vector<256xf32> to vector<1x256xf32>
    %31 = arith.mulf %20, %30 : vector<1x256xf32>
    %cst_13 = arith.constant 1.000000e+00 : f32
    %32 = vector.broadcast %cst_13 : f32 to vector<1x256xf32>
    %33 = arith.subf %32, %23 : vector<1x256xf32>
    %34 = arith.mulf %33, %33 : vector<1x256xf32>
    %cst_14 = arith.constant -1.000000e+00 : f32
    %35 = vector.broadcast %cst_14 : f32 to vector<1x256xf32>
    %36 = arith.mulf %35, %34 : vector<1x256xf32>
    %37 = arith.mulf %36, %31 : vector<1x256xf32>
    %cst_15 = arith.constant dense<0.000000e+00> : vector<1xf32>
    %38 = vector.multi_reduction <add>, %37, %cst_15 [1] : vector<1x256xf32> to vector<1xf32>
    %39 = vector.shape_cast %38 : vector<1xf32> to vector<1x1xf32>
    %c0_16 = arith.constant 0 : index
    %c0_17 = arith.constant 0 : index
    %c0_18 = arith.constant 0 : index
    %c0_19 = arith.constant 0 : index
    %40 = vector.load %arg5[%c0_16, %c0_17, %c0_18, %c0_19] : memref<1x1x1x1xf32, #tpu.memory_space<vmem>>, vector<1x1x1x1xf32>
    %41 = vector.shape_cast %40 : vector<1x1x1x1xf32> to vector<1x1xf32>
    %42 = vector.shape_cast %39 : vector<1x1xf32> to vector<1x1x1x1xf32>
    tpu.vector_store %arg5[%c0_16, %c0_17, %c0_18, %c0_19], %42 {strides = array<i32>} : memref<1x1x1x1xf32, #tpu.memory_space<vmem>>, vector<1x1x1x1xf32>,
    return
  }
  func.func @transform_0(%arg0: i32, %arg1: i32) -> (i32, i32, i32) {
    %c0_i32 = arith.constant 0 : i32
    %c0_i32_0 = arith.constant 0 : i32
    return %arg0, %c0_i32, %arg1 : i32, i32, i32
  }
  func.func @transform_1(%arg0: i32, %arg1: i32) -> (i32, i32, i32) {
    %c0_i32 = arith.constant 0 : i32
    %c0_i32_0 = arith.constant 0 : i32
    return %arg0, %c0_i32, %arg1 : i32, i32, i32
  }
  func.func @transform_2(%arg0: i32, %arg1: i32) -> (i32, i32) {
    %c0_i32 = arith.constant 0 : i32
    %c0_i32_0 = arith.constant 0 : i32
    %c0_i32_1 = arith.constant 0 : i32
    return %c0_i32, %c0_i32_0 : i32, i32
  }
  func.func @transform_3(%arg0: i32, %arg1: i32) -> (i32, i32, i32, i32) {
    %c0_i32 = arith.constant 0 : i32
    %c0_i32_0 = arith.constant 0 : i32
    %c0_i32_1 = arith.constant 0 : i32
    return %arg0, %arg1, %c0_i32, %c0_i32_0 : i32, i32, i32, i32
  }
}

</mosaic_0001>

<llo_original>
// kernel: tpu_custom_call.1
$region0: #{tpu_custom_call.1}
  #allocation0 [shape = 'u32[]', space=smem, size = 0x4, offset = 0x4, fixed_abs, tag = 'smem constant byte address 0x4 - core index']
  #allocation1 [shape = 'u32[144,128]{1,0:T(1,128)}', space=vmem, size = 0x12000, scoped, tag = 'internal scratch']
  %s0 = inlined_call_operand.hbm [shape: f32[2,4,256], index: 0, kind: input, shape index: {}]
  %s1 = inlined_call_operand.vmem [shape: s32[2,1,256], index: 1, kind: input, shape index: {}]
  %s2 = inlined_call_operand.vmem [shape: f32[4,1], index: 2, kind: input, shape index: {}]
  %s3 = inlined_call_operand.vmem [shape: f32[2,1,1,1], index: 3, kind: output, shape index: {}]
  %s4 = sld [smem:[#allocation0]]
  $region49: #{tpu_custom_call.1} parent=0
    _
  %s6 = ssub.s32 1, %s4
  %s7 = scalar_select 0, %s6, %s4
  $region1: #{tpu_custom_call.1} parent=0
    #allocation2 [shape = 'u8[8192]{0}', space=vmem, size = 0x2000, scoped, tag = 'input window, operand 0']
    #allocation3 [shape = 's32[2]{0}', space=sflag, size = 0x8, scoped, tag = 'scoped memory for tpu_custom_call.1']
    %8 = vsyncpa [#allocation3], 0
    %s9 = scalar_lea.sflag [#allocation3], 1
    %10 = vsyncpa %s9, 0
    loop: start=0, step=1, limit=4
    $region2: #{tpu_custom_call.1} parent=1 // loop_pre_header
      _
    $region3: #{tpu_custom_call.1} parent=1 // loop_header
      %s12 = sphi 0, %s16
      %p13 = scmp.ge.s32.totalorder %s12, 4
      %s19 = sphi 0, %s31
      %s20 = sphi 0, %s27
      %s21 = sphi 0, %s19
      %s22 = sphi 0, %s20
      %s23 = sphi 0, %s21
      %s24 = sphi 0, %s22
      %s36 = sphi 0, %s38
      %s39 = sphi 0, %s36
      %s40 = sphi 0, %s39
      %s56 = sphi 0, %s40
      %s64 = sphi 0, %s66
      %s67 = sphi 0, %s64
      %s68 = sphi 0, %s67
      %s84 = sphi 0, %s68
      %s88 = sphi 0, %s88
      %s90 = sphi 0, %s88
      %s91 = sphi 0, %s90
      %s105 = sphi 0, %s91
      %s113 = sphi 0, %s115
      %s116 = sphi 0, %s113
      %s117 = sphi 0, %s116
      %s133 = sphi 0, %s117
    $region4: #{tpu_custom_call.1} parent=1 // loop_header_branch
      %15 = sbr.rel (%p13) target = $region8
    $region5: #{tpu_custom_call.1} parent=1 // loop_body
      %s17 = ssub.s32 %s12, 1
      %s18 = ssub.s32 %s12, 2
      %s25 = sadd.s32 1, %s20
      %p26 = scmp.ge.s32.totalorder %s25, 1
      %s27 = scalar_select %p26, 0, %s25
      %s28 = sadd.s32 1, %s19
      %s29 = scalar_select %p26, %s28, %s19
      %p30 = scmp.ge.s32.totalorder %s29, 2
      %s31 = scalar_select %p30, 0, %s29
      %s32 = ssub.s32 %s19, %s31
      %s33 = ssub.s32 %s20, %s27
      %s34 = sor.u32 %s32, %s33
      %p35 = scmp.eq.s32.totalorder %s34, 0
      %s37 = sadd.s32 %s36, 1
      %s38 = scalar_select %p35, %s36, %s37
      %p41 = pneg %p35
      %p42 = scmp.eq.s32.totalorder %s12, 1
      %p43 = por %p41, %p42
      %p44 = scmp.ne.s32.totalorder %s36, %s39
      %p45 = scmp.eq.s32.totalorder %s12, 0
      %p46 = por %p44, %p45
      %p47 = scmp.ne.s32.totalorder %s36, %s39
      %p48 = scmp.eq.s32.totalorder %s17, 1
      %p49 = por %p47, %p48
      %p50 = scmp.ne.s32.totalorder %s39, %s40
      %p51 = scmp.eq.s32.totalorder %s17, 0
      %p52 = por %p50, %p51
      %p53 = scmp.ne.s32.totalorder %s39, %s40
      %p54 = scmp.eq.s32.totalorder %s18, 1
      %p55 = por %p53, %p54
      %p57 = scmp.ne.s32.totalorder %s40, %s56
      %p58 = scmp.eq.s32.totalorder %s18, 0
      %p59 = por %p57, %p58
      %s60 = ssub.s32 %s19, %s31
      %s61 = ssub.s32 %s20, %s27
      %s62 = sor.u32 %s60, %s61
      %p63 = scmp.eq.s32.totalorder %s62, 0
      %s65 = sadd.s32 %s64, 1
      %s66 = scalar_select %p63, %s64, %s65
      %p69 = pneg %p63
      %p70 = scmp.eq.s32.totalorder %s12, 1
      %p71 = por %p69, %p70
      %p72 = scmp.ne.s32.totalorder %s64, %s67
      %p73 = scmp.eq.s32.totalorder %s12, 0
      %p74 = por %p72, %p73
      %p75 = scmp.ne.s32.totalorder %s64, %s67
      %p76 = scmp.eq.s32.totalorder %s17, 1
      %p77 = por %p75, %p76
      %p78 = scmp.ne.s32.totalorder %s67, %s68
      %p79 = scmp.eq.s32.totalorder %s17, 0
      %p80 = por %p78, %p79
      %p81 = scmp.ne.s32.totalorder %s67, %s68
      %p82 = scmp.eq.s32.totalorder %s18, 1
      %p83 = por %p81, %p82
      %p85 = scmp.ne.s32.totalorder %s68, %s84
      %p86 = scmp.eq.s32.totalorder %s18, 0
      %p87 = por %p85, %p86
      %s89 = sadd.s32 %s88, 1
      %p92 = scmp.eq.s32.totalorder %s12, 1
      %p93 = scmp.ne.s32.totalorder %s88, %s90
      %p94 = scmp.eq.s32.totalorder %s12, 0
      %p95 = por %p93, %p94
      %p96 = scmp.ne.s32.totalorder %s88, %s90
      %p97 = scmp.eq.s32.totalorder %s17, 1
      %p98 = por %p96, %p97
      %p99 = scmp.ne.s32.totalorder %s90, %s91
      %p100 = scmp.eq.s32.totalorder %s17, 0
      %p101 = por %p99, %p100
      %p102 = scmp.ne.s32.totalorder %s90, %s91
      %p103 = scmp.eq.s32.totalorder %s18, 1
      %p104 = por %p102, %p103
      %p106 = scmp.ne.s32.totalorder %s91, %s105
      %p107 = scmp.eq.s32.totalorder %s18, 0
      %p108 = por %p106, %p107
      %s109 = ssub.s32 %s19, %s31
      %s110 = ssub.s32 %s20, %s27
      %s111 = sor.u32 %s109, %s110
      %p112 = scmp.eq.s32.totalorder %s111, 0
      %s114 = sadd.s32 %s113, 1
      %s115 = scalar_select %p112, %s113, %s114
      %p118 = pneg %p112
      %p119 = scmp.eq.s32.totalorder %s12, 1
      %p120 = por %p118, %p119
      %p121 = scmp.ne.s32.totalorder %s113, %s116
      %p122 = scmp.eq.s32.totalorder %s12, 0
      %p123 = por %p121, %p122
      %p124 = scmp.ne.s32.totalorder %s113, %s116
      %p125 = scmp.eq.s32.totalorder %s17, 1
      %p126 = por %p124, %p125
      %p127 = scmp.ne.s32.totalorder %s116, %s117
      %p128 = scmp.eq.s32.totalorder %s17, 0
      %p129 = por %p127, %p128
      %p130 = scmp.ne.s32.totalorder %s116, %s117
      %p131 = scmp.eq.s32.totalorder %s18, 1
      %p132 = por %p130, %p131
      %p134 = scmp.ne.s32.totalorder %s117, %s133
      %p135 = scmp.eq.s32.totalorder %s18, 0
      %p136 = por %p134, %p135
      %p137 = scmp.le.s32.totalorder 1, %s12
      %p138 = scmp.lt.s32.totalorder %s12, 3
      %p139 = pnand %p137, %p138
      %p140 = pneg %p139
      // Predicated region
      $region9: #{tpu_custom_call.1} parent=5 // pred_check
        _
      $region10: #{tpu_custom_call.1} parent=5 // pred_check_branch
        %142 = sbr.rel (%p139) target = $region12
      $region11: #{tpu_custom_call.1} parent=5 // pred_region
        %s143 = ssub.s32 %s12, 1
        // Predicated region
        $region13: #{tpu_custom_call.1} parent=11 // pred_check
          %p144 = pneg %p101
        $region14: #{tpu_custom_call.1} parent=11 // pred_check_branch
          %146 = sbr.rel (%p144) target = $region16
        $region15: #{tpu_custom_call.1} parent=11 // pred_region
          _
        $region16: #{tpu_custom_call.1} parent=11 // pred_fallthru
          _
      $region12: #{tpu_custom_call.1} parent=5 // pred_fallthru
        _
      %p147 = scmp.lt.s32.totalorder %s12, 2
      // Predicated region
      $region17: #{tpu_custom_call.1} parent=5 // pred_check
        %p148 = pneg %p147
      $region18: #{tpu_custom_call.1} parent=5 // pred_check_branch
        %150 = sbr.rel (%p148) target = $region20
      $region19: #{tpu_custom_call.1} parent=5 // pred_region
        // Predicated region
        $region21: #{tpu_custom_call.1} parent=19 // pred_check
          %p151 = pneg %p46
        $region22: #{tpu_custom_call.1} parent=19 // pred_check_branch
          %153 = sbr.rel (%p151) target = $region24
        $region23: #{tpu_custom_call.1} parent=19 // pred_region
          %s154 = sand.u32 %s36, 1
          %s155 = scalar_lea.sflag [#allocation3], %s154
          %s156 = sand.u32 %s36, 1
          %s157 = smul.addr %s156, 8
          %s158 = scalar_lea.vmem [#allocation2], %s157
          %s159 = smul.u32 2, %s20
          %s161 = ssub.s32 128, 128
          %162 = vsyncadd %s155, %s161
          %s163 = smul.addr %s19, 2
          %s164 = sadd.s32 %s159, %s163
          %s165 = smul.addr %s164, 64
          %s166 = scalar_lea.hbm %s0, %s165
          %s168 = sshll.u32 %s158, 4
          %s169 = int_to_ptr.vmem [resolvable:$true] %s168
          %171 = dma.hbm_to_vmem [thread:$0]  %s166, 128, %s169, %s155
        $region24: #{tpu_custom_call.1} parent=19 // pred_fallthru
          _
        // Predicated region
        $region25: #{tpu_custom_call.1} parent=19 // pred_check
          %p172 = pneg %p74
        $region26: #{tpu_custom_call.1} parent=19 // pred_check_branch
          %174 = sbr.rel (%p172) target = $region28
        $region27: #{tpu_custom_call.1} parent=19 // pred_region
          %s175 = smul.u32 2, %s20
          %p176 = scmp.lt.s32.totalorder %s19, 1
          %s177 = scalar_select %p176, %s19, 1
          %p178 = scmp.lt.s32.totalorder %s175, 1
          %s179 = scalar_select %p178, %s175, 1
          %s180 = smul.addr %s177, 2
          %s181 = sadd.s32 %s179, %s180
          %s182 = scalar_lea.vmem %s1, %s181
          %s183 = smul.u32 2, %s20
        $region28: #{tpu_custom_call.1} parent=19 // pred_fallthru
          _
      $region20: #{tpu_custom_call.1} parent=5 // pred_fallthru
        _
      %p184 = scmp.le.s32.totalorder 1, %s12
      %p185 = scmp.lt.s32.totalorder %s12, 3
      %p186 = pnand %p184, %p185
      %p187 = pneg %p186
      // Predicated region
      $region29: #{tpu_custom_call.1} parent=5 // pred_check
        _
      $region30: #{tpu_custom_call.1} parent=5 // pred_check_branch
        %189 = sbr.rel (%p186) target = $region32
      $region31: #{tpu_custom_call.1} parent=5 // pred_region
        %s190 = ssub.s32 %s12, 1
        %s191 = sand.u32 %s39, 1
        %s192 = scalar_lea.sflag [#allocation3], %s191
        %s193 = sand.u32 %s39, 1
        %s194 = smul.addr %s193, 8
        %s195 = scalar_lea.vmem [#allocation2], %s194
        // Predicated region
        $region33: #{tpu_custom_call.1} parent=31 // pred_check
          %p196 = pneg %p52
        $region34: #{tpu_custom_call.1} parent=31 // pred_check_branch
          %198 = sbr.rel (%p196) target = $region36
        $region35: #{tpu_custom_call.1} parent=31 // pred_region
          %199 = dma.done %s192, 128
        $region36: #{tpu_custom_call.1} parent=31 // pred_fallthru
          _
        %s200 = sand.u32 %s39, 1
        %s201 = scalar_lea.sflag [#allocation3], %s200
        %s202 = sand.u32 %s39, 1
        %s203 = smul.addr %s202, 8
        %s204 = scalar_lea.vmem [#allocation2], %s203
        %p205 = pneg %p52
        %p206 = pneg %p49
        %s207 = smul.u32 2, %s22
        %p208 = scmp.lt.s32.totalorder %s21, 1
        %s209 = scalar_select %p208, %s21, 1
        %p210 = scmp.lt.s32.totalorder %s207, 1
        %s211 = scalar_select %p210, %s207, 1
        %s212 = smul.addr %s209, 2
        %s213 = sadd.s32 %s211, %s212
        %s214 = scalar_lea.vmem %s1, %s213
        %p215 = pneg %p80
        %p216 = pneg %p77
        %p217 = pneg %p101
        %p218 = pneg %p98
        %p219 = pneg %p129
        %p220 = pneg %p126
        %p221 = scmp.lt.s32.totalorder %s21, 1
        %s222 = scalar_select %p221, %s21, 1
        %p223 = scmp.lt.s32.totalorder %s22, 0
        %s224 = scalar_select %p223, %s22, 0
        %s225 = sadd.s32 %s224, %s222
        %s226 = scalar_lea.vmem %s3, %s225
        %s227 = smul.u32 2, %s22
        %s228 = smul.u32 2, %s22
        %p229 = scmp.lt.s32.totalorder %s21, 1
        %s230 = scalar_select %p229, %s21, 1
        %p231 = scmp.lt.s32.totalorder %s228, 1
        %s232 = scalar_select %p231, %s228, 1
        %s233 = smul.addr %s230, 2
        %s234 = sadd.s32 %s232, %s233
        %s235 = scalar_lea.vmem %s1, %s234
        %s236 = smul.u32 2, %s22
        %p237 = scmp.lt.s32.totalorder %s21, 1
        %s238 = scalar_select %p237, %s21, 1
        %p239 = scmp.lt.s32.totalorder %s22, 0
        %s240 = scalar_select %p239, %s22, 0
        %s241 = sadd.s32 %s240, %s238
        %s242 = scalar_lea.vmem %s3, %s241
        %v243 = vld [vmem:[%s195] sm:$0xff]
        %v244 = vld [vmem:[%s235] sm:$0x3]
        %v246 = vcombine.high %v243, %v243
        %vm248 = vcmask 1043456
        %v249 = vsel %vm248, %v243, -inf
        %v250 = vrot.slane %v249, 4
        %v251 = vmax.f32 %v249, %v250
        %v252 = vrot.slane %v251, 2
        %v253 = vmax.f32 %v251, %v252
        %v254 = vrot.slane %v253, 1
        %v255 = vmax.f32 %v253, %v254
        %v256 = vsel %vm248, %v246, -inf
        %v257 = vrot.slane %v256, 4
        %v258 = vmax.f32 %v256, %v257
        %v259 = vrot.slane %v258, 2
        %v260 = vmax.f32 %v258, %v259
        %v261 = vrot.slane %v260, 1
        %v262 = vmax.f32 %v260, %v261
        %v265 = vcombine.low %v255, %v262
        %v267 = vsub.f32 %v243, %v265
        %v268 = vmul.f32 %v267, 1.442695
        %v269 = vpow.pop %v268
        %v271 = vcombine.high %v269, %v269
        %v273 = vsel %vm248, %v269, 0.0
        %v274 = vrot.slane %v273, 4
        %v275 = vadd.f32 %v273, %v274
        %v276 = vrot.slane %v275, 2
        %v277 = vadd.f32 %v275, %v276
        %v278 = vrot.slane %v277, 1
        %v279 = vadd.f32 %v277, %v278
        %v280 = vsel %vm248, %v271, 0.0
        %v281 = vrot.slane %v280, 4
        %v282 = vadd.f32 %v280, %v281
        %v283 = vrot.slane %v282, 2
        %v284 = vadd.f32 %v282, %v283
        %v285 = vrot.slane %v284, 1
        %v286 = vadd.f32 %v284, %v285
        %v287 = vlog2.pop %v279
        %v288 = vmul.f32 %v287, 0.6931472
        %v289 = vlog2.pop %v286
        %v290 = vmul.f32 %v289, 0.6931472
        %v291 = vlaneseq
        %v292 = vshrl.u32 %v291, 7
        %v293 = vlaneseq
        %v294 = vshrl.u32 %v293, 7
        %v295 = vsub.s32 0, %v294
        %v296 = vrot.slane %v244, %v295
        %v297 = vlaneseq
        %v298 = vshrl.u32 %v297, 7
        %v299 = vsub.s32 1, %v298
        %v300 = vrot.slane %v244, %v299
        %vm301 = vcmp.eq.s32.totalorder %v292, %v296
        %vm302 = vcmp.eq.s32.totalorder %v292, %v300
        %v304 = vcombine.high %v267, %v267
        %v306 = vsel %vm301, %v267, 0.0
        %v307 = vsel %vm302, %v304, 0.0
        %v308 = vsel %vm248, %v306, 0.0
        %v309 = vrot.slane %v308, 4
        %v310 = vadd.f32 %v308, %v309
        %v311 = vrot.slane %v310, 2
        %v312 = vadd.f32 %v310, %v311
        %v313 = vrot.slane %v312, 1
        %v314 = vadd.f32 %v312, %v313
        %v315 = vsel %vm248, %v307, 0.0
        %v316 = vrot.slane %v315, 4
        %v317 = vadd.f32 %v315, %v316
        %v318 = vrot.slane %v317, 2
        %v319 = vadd.f32 %v317, %v318
        %v320 = vrot.slane %v319, 1
        %v321 = vadd.f32 %v319, %v320
        %v322 = vsub.f32 %v314, %v288
        %v323 = vsub.f32 %v321, %v290
        %v324 = vmul.f32 %v322, 1.442695
        %v325 = vpow.pop %v324
        %v326 = vmul.f32 %v323, 1.442695
        %v327 = vpow.pop %v326
        %v328 = vmin.f32 %v325, 1.0
        %v329 = vmin.f32 %v327, 1.0
        %v330 = vld [vmem:[%s2] sm:$0xf]
        %332 = vset.pattern.permute.xlu0 0
        %333 = vperm.xlu0 %332, %v330
        %v334 = vpop.permute.xlu0 %333
        %v336 = vsel %vm301, %v334, 0.0
        %v337 = vsel %vm302, %v334, 0.0
        %v338 = vsel %vm248, %v336, 0.0
        %v339 = vrot.slane %v338, 4
        %v340 = vadd.f32 %v338, %v339
        %v341 = vrot.slane %v340, 2
        %v342 = vadd.f32 %v340, %v341
        %v343 = vrot.slane %v342, 1
        %v344 = vadd.f32 %v342, %v343
        %v345 = vsel %vm248, %v337, 0.0
        %v346 = vrot.slane %v345, 4
        %v347 = vadd.f32 %v345, %v346
        %v348 = vrot.slane %v347, 2
        %v349 = vadd.f32 %v347, %v348
        %v350 = vrot.slane %v349, 1
        %v351 = vadd.f32 %v349, %v350
        %v352 = vmul.f32 %v322, %v344
        %v353 = vmul.f32 %v323, %v351
        %v354 = vsub.f32 1.0, %v328
        %v355 = vsub.f32 1.0, %v329
        %v356 = vmul.f32 %v354, %v354
        %v357 = vmul.f32 %v355, %v355
        %v358 = vmul.f32 %v356, -1.0
        %v359 = vmul.f32 %v357, -1.0
        %v360 = vmul.f32 %v358, %v352
        %v361 = vmul.f32 %v359, %v353
        %v362 = vadd.f32 %v360, %v361
        %363 = vadd.xlane.f32.xlu0 %v362
        %v364 = vpop.xlane.xlu0 %363
        %vm365 = vcmask 0
        %366 = vst.msk [vmem:[%s242] sm:$0x1] %vm365, %v364
        %p367 = scmp.lt.s32.totalorder %s21, 1
        %s368 = scalar_select %p367, %s21, 1
        %p369 = scmp.lt.s32.totalorder %s22, 0
        %s370 = scalar_select %p369, %s22, 0
        %s371 = sadd.s32 %s370, %s368
        %s372 = scalar_lea.vmem %s3, %s371
        // Predicated region
        $region37: #{tpu_custom_call.1} parent=31 // pred_check
          %p373 = pneg %p126
        $region38: #{tpu_custom_call.1} parent=31 // pred_check_branch
          %375 = sbr.rel (%p373) target = $region40
        $region39: #{tpu_custom_call.1} parent=31 // pred_region
          _
        $region40: #{tpu_custom_call.1} parent=31 // pred_fallthru
          _
      $region32: #{tpu_custom_call.1} parent=5 // pred_fallthru
        _
      %p376 = scmp.le.s32.totalorder 2, %s12
      // Predicated region
      $region41: #{tpu_custom_call.1} parent=5 // pred_check
        %p377 = pneg %p376
      $region42: #{tpu_custom_call.1} parent=5 // pred_check_branch
        %379 = sbr.rel (%p377) target = $region44
      $region43: #{tpu_custom_call.1} parent=5 // pred_region
        %s380 = ssub.s32 %s12, 2
        // Predicated region
        $region45: #{tpu_custom_call.1} parent=43 // pred_check
          %p381 = pneg %p132
        $region46: #{tpu_custom_call.1} parent=43 // pred_check_branch
          %383 = sbr.rel (%p381) target = $region48
        $region47: #{tpu_custom_call.1} parent=43 // pred_region
          %p384 = scmp.lt.s32.totalorder %s23, 1
          %s385 = scalar_select %p384, %s23, 1
          %p386 = scmp.lt.s32.totalorder %s24, 0
          %s387 = scalar_select %p386, %s24, 0
          %s388 = sadd.s32 %s387, %s385
          %s389 = scalar_lea.vmem %s3, %s388
        $region48: #{tpu_custom_call.1} parent=43 // pred_fallthru
          _
      $region44: #{tpu_custom_call.1} parent=5 // pred_fallthru
        _
    $region6: #{tpu_custom_call.1} parent=1 // loop_footer
      %s16 = sadd.s32 1, %s12
    $region7: #{tpu_custom_call.1} parent=1 // loop_footer_branch
      %11 = sbr.rel target = $region3
    $region8: #{tpu_custom_call.1} parent=1 // loop_exit
      _
    %390 = vsyncpa [#allocation3], 1
    %s391 = scalar_lea.sflag [#allocation3], 1
    %392 = vsyncpa %s391, 1

</llo_original>
